<compile_context>
chip_gen: v6e
topology: v6e:2x2x1
jax: 0.10.0
libtpu: 0.0.40
codegen_flags: <defaults>
</compile_context>

<pallas_src>
import functools

import jax
import jax.numpy as jnp
from jax import lax
from jax.experimental import pallas as pl
from jax.experimental.pallas import tpu as pltpu


# --------------------------- fused Pallas kernel -----------------------------

def _fused_mlp_max_kernel(x_ref, *refs, num_layers, K, G):
    """Fused (1x1 conv with folded BN-scale + shift + ReLU) x num_layers,
    then max over the K neighbors, with optional lane-dense output packing.

    x_ref : (tbs*K, Cin) bf16, rows ordered (s, k) with the neighbor index k
            fastest, so each group of K consecutive rows belongs to one s.
    refs  : per-layer (w [Cin_l, Cout_l] bf16, shift [1, Cout_l] f32) pairs,
            followed by o_ref (tbs//G, G*Cout_last) f32.
    """
    o_ref = refs[2 * num_layers]
    y = x_ref[...]                                        # bf16 (tbs*K, Cin)
    for l in range(num_layers):
        w = refs[2 * l][...]                              # bf16 (Cin_l, Cout_l), BN scale folded
        shift = refs[2 * l + 1][...]                      # f32  (1, Cout_l)
        y = jnp.dot(y, w, preferred_element_type=jnp.float32)   # MXU, f32 acc
        y = jnp.maximum(y + shift, 0.0)                   # folded BN shift + ReLU (f32)
        if l + 1 < num_layers:
            y = y.astype(jnp.bfloat16)                    # bf16 feed for next MXU pass

    rows, cout = y.shape
    tbs = rows // K
    if G == 1:
        # K % 8 == 0 -> this reshape is a layout no-op (regroups whole sublane tiles).
        o_ref[...] = jnp.max(y.reshape(tbs, K, cout), axis=1)
    else:
        # Lane-dense packing: G centroids per output row (G * cout == 128 lanes).
        # All reshapes/slices stay sublane-tile aligned (K % 8 == 0).
        y3 = y.reshape(tbs // G, G * K, cout)
        parts = [jnp.max(y3[:, g * K:(g + 1) * K, :], axis=1) for g in range(G)]
        o_ref[...] = jnp.concatenate(parts, axis=-1)      # (tbs//G, G*cout) full vst


def _round_up(x, m):
    return ((x + m - 1) // m) * m


def _vmem_budget():
    """Generation-aware (vmem_limit_bytes, tile-selection budget)."""
    cap = 128 * 1024 * 1024
    try:
        info = pltpu.get_tpu_info()
        cap = int(getattr(info, "vmem_capacity_bytes", cap))
    except Exception:
        pass
    if cap >= 100 * 1024 * 1024:            # v5e / v6e: 128 MiB physical VMEM
        return 96 * 1024 * 1024, 40 * 1024 * 1024
    else:                                   # v7x: 64 MiB per TensorCore
        return 48 * 1024 * 1024, 18 * 1024 * 1024


def _pick_tbs(BS, K, cin, layer_shapes, cout_last, G, budget_bytes):
    """Largest B*S row tile that divides BS and keeps the (8,128)-padding-aware
    per-step VMEM footprint under budget_bytes."""
    cin_p = _round_up(cin, 128)
    cout_max_p = max(_round_up(co, 128) for (_, co) in layer_shapes)

    # Parameter blocks: lane/sublane padded, double-buffered by the pipeline.
    param_bytes = 0
    for (ci, co) in layer_shapes:
        param_bytes += _round_up(ci, 16) * _round_up(co, 128) * 2   # bf16 weights
        param_bytes += 8 * _round_up(co, 128) * 4                   # f32 shift row
    param_bytes *= 2

    for tbs in (2048, 1024, 512, 256, 128, 64, 32, 16, 8):
        if BS % tbs or tbs % G:
            continue
        out_rows = tbs // G
        if (out_rows % 8) and tbs != BS:
            continue                       # output block must be sublane aligned
        rows = tbs * K
        in_block = _round_up(rows, 16) * cin_p * 2                    # bf16 input
        out_block = _round_up(out_rows, 8) * _round_up(G * cout_last, 128) * 4
        interm = rows * cout_max_p * 4 * 2       # ~two live f32 activation tensors
        foot = 2 * in_block + 2 * out_block + param_bytes + interm
        if foot <= budget_bytes:
            return tbs
    return BS  # tiny / odd BS: a full-extent block is always legal


def fused_mlp_max(x, layers, K):
    """x: [BS*K, Cin] bf16 (neighbor index fastest).
    layers: [(w [Cin,Cout] bf16 with BN scale folded in, shift [1,Cout] f32), ...]
    Returns [BS, Cout_last] f32: per-centroid max over the K neighbors."""
    M, Cin = x.shape
    assert K % 8 == 0 and M % K == 0
    BS = M // K
    cout_last = layers[-1][0].shape[1]

    # Lane-dense output packing factor (only when it reshapes cleanly).
    G = 1
    if cout_last < 128 and 128 % cout_last == 0 and BS % (128 // cout_last) == 0:
        G = 128 // cout_last

    layer_shapes = [(w.shape[0], w.shape[1]) for (w, _) in layers]
    vmem_limit, budget = _vmem_budget()
    tbs = _pick_tbs(BS, K, Cin, layer_shapes, cout_last, G, budget)

    in_specs = [pl.BlockSpec((tbs * K, Cin), lambda i: (i, 0))]
    flat_params = []
    for (w, shift) in layers:
        ci, co = w.shape
        # Constant blocks: index_map is fixed so they are DMA'd only once.
        # TODO(synk): pipeline_mode=pl.Buffered(1) would drop their second
        # buffer; skipped here to keep one known-good code path.
        in_specs.append(pl.BlockSpec((ci, co), lambda i: (0, 0)))
        in_specs.append(pl.BlockSpec((1, co), lambda i: (0, 0)))
        flat_params += [w, shift]

    out_rows, out_cols = BS // G, G * cout_last
    kernel = functools.partial(_fused_mlp_max_kernel,
                               num_layers=len(layers), K=K, G=G)
    out = pl.pallas_call(
        kernel,
        out_shape=jax.ShapeDtypeStruct((out_rows, out_cols), jnp.float32),
        grid=(BS // tbs,),
        in_specs=in_specs,
        out_specs=pl.BlockSpec((tbs // G, out_cols), lambda i: (i, 0)),
        compiler_params=pltpu.CompilerParams(
            # "parallel" lets multi-TensorCore parts shard the row-tile axis.
            # TODO(synk): evaluate pltpu.CORE_PARALLEL on dual-TC parts.
            dimension_semantics=("parallel",),
            vmem_limit_bytes=vmem_limit),
    )(x, *flat_params)
    # Unpack the lane-dense rows back to one centroid per row (pure reshape).
    return out.reshape(BS, cout_last)


# ------------------------- plain-JAX glue (grouping) -------------------------

def farthest_point_sample(xyz, npoint, key):
    """xyz: [B, N, 3] -> centroid indices [B, npoint] (int32)."""
    B, N, _ = xyz.shape
    farthest = jax.random.randint(key, (B,), 0, N, dtype=jnp.int32)
    distance = jnp.full((B, N), 1e10, dtype=xyz.dtype)
    centroids = jnp.zeros((B, npoint), dtype=jnp.int32)

    def body(i, carry):
        centroids, distance, farthest = carry
        centroids = centroids.at[:, i].set(farthest)
        centroid = jnp.take_along_axis(xyz, farthest[:, None, None], axis=1)
        dist = jnp.sum((xyz - centroid) ** 2, -1)
        distance = jnp.minimum(distance, dist)
        farthest = jnp.argmax(distance, axis=-1).astype(jnp.int32)
        return centroids, distance, farthest

    centroids, _, _ = lax.fori_loop(0, npoint, body, (centroids, distance, farthest))
    return centroids


def index_points(points, idx):
    """points: [B, N, C], idx: [B, ...] -> [B, ..., C]."""
    B = points.shape[0]
    C = points.shape[-1]
    idx_flat = idx.reshape(B, -1)
    gathered = jnp.take_along_axis(points, idx_flat[..., None], axis=1)
    return gathered.reshape(idx.shape + (C,))


def square_distance(src, dst):
    dist = -2.0 * jnp.matmul(src, jnp.swapaxes(dst, 1, 2))
    dist = dist + jnp.sum(src ** 2, -1)[..., None]
    dist = dist + jnp.sum(dst ** 2, -1)[:, None, :]
    return dist


def query_ball_point(radius, nsample, xyz, new_xyz):
    B, N, _ = xyz.shape
    S = new_xyz.shape[1]
    group_idx = jnp.broadcast_to(jnp.arange(N, dtype=jnp.int32), (B, S, N))
    sqrdists = square_distance(new_xyz, xyz)
    group_idx = jnp.where(sqrdists > radius ** 2, jnp.int32(N), group_idx)
    group_idx = jnp.sort(group_idx, axis=-1)[:, :, :nsample]
    group_first = group_idx[:, :, 0:1]
    group_idx = jnp.where(group_idx == N, group_first, group_idx)
    return group_idx


# -------------------------- module: params + forward -------------------------

def init_params(key, in_channel, mlp_list):
    """Synthetic Conv2d(1x1) + BatchNorm2d (eval mode) params.  The conv bias
    and the BN mean/beta are folded into a single shift, and the BN scale is
    folded into the weight columns (in f32) before the bf16 cast."""
    params = []
    eps = 1e-5
    for mlp in mlp_list:
        last = in_channel + 3
        layers = []
        for out in mlp:
            key, k1, k2, k3, k4 = jax.random.split(key, 5)
            w = 0.1 * jax.random.normal(k1, (last, out), jnp.float32)    # [Cin, Cout]
            b = 0.1 * jax.random.normal(k2, (1, out), jnp.float32)
            gamma = 1.0 + 0.1 * jax.random.normal(k3, (1, out), jnp.float32)
            beta = 0.1 * jax.random.normal(k4, (1, out), jnp.float32)
            running_mean = jnp.zeros((1, out), jnp.float32)
            running_var = jnp.ones((1, out), jnp.float32)
            scale = gamma / jnp.sqrt(running_var + eps)
            shift = beta + (b - running_mean) * scale     # conv bias + BN folded
            w_folded = (w * scale).astype(jnp.bfloat16)   # BN scale folded into W
            layers.append((w_folded, shift))
            last = out
        params.append(layers)
    return params


def pointnet_sa_msg_forward(params, xyz, points, npoint, radius_list,
                            nsample_list, fps_key):
    """
    xyz:    [B, 3, N]   (same NCW convention as the PyTorch module)
    points: [B, D, N] or None
    returns (new_xyz [B, 3, S], new_points_concat [B, D', S])
    """
    xyz_t = jnp.transpose(xyz, (0, 2, 1))                       # [B, N, 3]
    points_t = jnp.transpose(points, (0, 2, 1)) if points is not None else None
    B, N, _ = xyz_t.shape
    S = npoint

    fps_idx = farthest_point_sample(xyz_t, S, fps_key)          # [B, S]
    new_xyz = index_points(xyz_t, fps_idx)                      # [B, S, 3]

    new_points_list = []
    for i, radius in enumerate(radius_list):
        K = nsample_list[i]
        group_idx = query_ball_point(radius, K, xyz_t, new_xyz)     # [B, S, K]
        grouped_xyz = index_points(xyz_t, group_idx)                # [B, S, K, 3]
        grouped_xyz = grouped_xyz - new_xyz[:, :, None, :]
        if points_t is not None:
            grouped_points = index_points(points_t, group_idx)      # [B, S, K, D]
            grouped_points = jnp.concatenate([grouped_points, grouped_xyz], axis=-1)
        else:
            grouped_points = grouped_xyz
        # TODO(synk): the XLA gather above still materializes [B,S,K,Cin] (bf16,
        # fused with the cast below) in HBM; moving the row gather inside the
        # fused kernel needs a robust data-dependent gather path (dynamic_gather
        # / per-row DMA) and is left to a follow-up.

        # Pad K up to a multiple of 8 by duplicating neighbor 0 (the max over K
        # is unchanged -- query_ball_point already pads with such duplicates).
        Kp = K
        if K % 8:
            pad = 8 - (K % 8)
            dup = jnp.broadcast_to(
                grouped_points[:, :, :1, :],
                grouped_points.shape[:2] + (pad, grouped_points.shape[-1]))
            grouped_points = jnp.concatenate([grouped_points, dup], axis=2)
            Kp = K + pad

        Cin = grouped_points.shape[-1]
        x = grouped_points.reshape(B * S * Kp, Cin).astype(jnp.bfloat16)
        new_points = fused_mlp_max(x, params[i], Kp)            # [B*S, Cout] f32
        Cout = new_points.shape[-1]
        new_points = new_points.reshape(B, S, Cout)
        new_points_list.append(jnp.transpose(new_points, (0, 2, 1)))  # [B, Cout, S]

    new_xyz_out = jnp.transpose(new_xyz, (0, 2, 1))                 # [B, 3, S]
    new_points_concat = jnp.concatenate(new_points_list, axis=1)    # [B, D', S]
    return new_xyz_out, new_points_concat


# ------------------------------------ main -----------------------------------

if __name__ == "__main__":
    # TODO(synk): BatchNorm is applied in eval-mode (running stats folded to an
    # affine); train-mode batch statistics would need a global cross-tile reduction.
    key = jax.random.PRNGKey(0)
    k_xyz, k_pts, k_fps, k_param = jax.random.split(key, 4)

    B, N, D = 2, 32, 4
    npoint = 8
    radius_list = [0.2, 0.4]
    nsample_list = [8, 16]
    mlp_list = [[16, 32], [16, 32]]

    xyz = jax.random.uniform(k_xyz, (B, 3, N), jnp.float32)
    points = jax.random.normal(k_pts, (B, D, N), jnp.float32)
    params = init_params(k_param, D, mlp_list)

    new_xyz, new_points_concat = pointnet_sa_msg_forward(
        params, xyz, points, npoint, radius_list, nsample_list, k_fps)
    jax.block_until_ready((new_xyz, new_points_concat))

    assert new_xyz.shape == (B, 3, npoint)
    assert new_points_concat.shape == (B, sum(m[-1] for m in mlp_list), npoint)
    assert bool(jnp.all(jnp.isfinite(new_points_concat)))
    print("KERNEL_OK")
</pallas_src>

<mosaic_0001>
module attributes {stable_mosaic.version = 11 : i64} {
  func.func @_fused_mlp_max_kernel(%arg0: i32, %arg1: memref<128x7xbf16, #tpu.memory_space<vmem>>, %arg2: memref<7x16xbf16, #tpu.memory_space<vmem>>, %arg3: memref<1x16xf32, #tpu.memory_space<vmem>>, %arg4: memref<16x32xbf16, #tpu.memory_space<vmem>>, %arg5: memref<1x32xf32, #tpu.memory_space<vmem>>, %arg6: memref<4x128xf32, #tpu.memory_space<vmem>>) attributes {dimension_semantics = [#tpu.dimension_semantics<parallel>], iteration_bounds = array<i64: 1>, scalar_prefetch = 0 : i64, scratch_operands = 0 : i64, tpu.core_type = #tpu.core_type<tc>, window_params = [{transform_indices = @transform_0, window_bounds = array<i64: 128, 7>}, {pipeline_mode = #tpu.pipeline_mode<synchronous>, transform_indices = @transform_1, window_bounds = array<i64: 7, 16>}, {pipeline_mode = #tpu.pipeline_mode<synchronous>, transform_indices = @transform_2, window_bounds = array<i64: 1, 16>}, {pipeline_mode = #tpu.pipeline_mode<synchronous>, transform_indices = @transform_3, window_bounds = array<i64: 16, 32>}, {pipeline_mode = #tpu.pipeline_mode<synchronous>, transform_indices = @transform_4, window_bounds = array<i64: 1, 32>}, {transform_indices = @transform_5, window_bounds = array<i64: 4, 128>}]} {
    %c0 = arith.constant 0 : index
    %c0_0 = arith.constant 0 : index
    %0 = vector.load %arg1[%c0, %c0_0] : memref<128x7xbf16, #tpu.memory_space<vmem>>, vector<128x7xbf16>
    %c0_1 = arith.constant 0 : index
    %c0_2 = arith.constant 0 : index
    %1 = vector.load %arg2[%c0_1, %c0_2] : memref<7x16xbf16, #tpu.memory_space<vmem>>, vector<7x16xbf16>
    %c0_3 = arith.constant 0 : index
    %c0_4 = arith.constant 0 : index
    %2 = vector.load %arg3[%c0_3, %c0_4] : memref<1x16xf32, #tpu.memory_space<vmem>>, vector<1x16xf32>
    %cst = arith.constant dense<0.000000e+00> : vector<128x16xf32>
    %3 = tpu.matmul %0, %1, %cst {dimension_numbers = #tpu.dot_dimension_numbers<[1], [0], [0], [1], [0, 0, 1, 1], [], []>} : vector<128x7xbf16>, vector<7x16xbf16>, vector<128x16xf32> -> vector<128x16xf32>
    %4 = vector.broadcast %2 : vector<1x16xf32> to vector<128x16xf32>
    %5 = arith.addf %3, %4 : vector<128x16xf32>
    %cst_5 = arith.constant 0.000000e+00 : f32
    %6 = vector.broadcast %cst_5 : f32 to vector<128x16xf32>
    %7 = arith.maximumf %5, %6 : vector<128x16xf32>
    %8 = arith.truncf %7 : vector<128x16xf32> to vector<128x16xbf16>
    %c0_6 = arith.constant 0 : index
    %c0_7 = arith.constant 0 : index
    %9 = vector.load %arg4[%c0_6, %c0_7] : memref<16x32xbf16, #tpu.memory_space<vmem>>, vector<16x32xbf16>
    %c0_8 = arith.constant 0 : index
    %c0_9 = arith.constant 0 : index
    %10 = vector.load %arg5[%c0_8, %c0_9] : memref<1x32xf32, #tpu.memory_space<vmem>>, vector<1x32xf32>
    %cst_10 = arith.constant dense<0.000000e+00> : vector<128x32xf32>
    %11 = tpu.matmul %8, %9, %cst_10 {dimension_numbers = #tpu.dot_dimension_numbers<[1], [0], [0], [1], [0, 0, 1, 1], [], []>} : vector<128x16xbf16>, vector<16x32xbf16>, vector<128x32xf32> -> vector<128x32xf32>
    %12 = vector.broadcast %10 : vector<1x32xf32> to vector<128x32xf32>
    %13 = arith.addf %11, %12 : vector<128x32xf32>
    %cst_11 = arith.constant 0.000000e+00 : f32
    %14 = vector.broadcast %cst_11 : f32 to vector<128x32xf32>
    %15 = arith.maximumf %13, %14 : vector<128x32xf32>
    %16 = vector.shape_cast %15 : vector<128x32xf32> to vector<4x32x32xf32>
    %17 = vector.extract_strided_slice %16 {offsets = [0, 0, 0], sizes = [4, 8, 32], strides = [1, 1, 1]} : vector<4x32x32xf32> to vector<4x8x32xf32>
    %cst_12 = arith.constant dense<0xFF800000> : vector<4x32xf32>
    %18 = vector.multi_reduction <maximumf>, %17, %cst_12 [1] : vector<4x8x32xf32> to vector<4x32xf32>
    %19 = vector.extract_strided_slice %16 {offsets = [0, 8, 0], sizes = [4, 8, 32], strides = [1, 1, 1]} : vector<4x32x32xf32> to vector<4x8x32xf32>
    %cst_13 = arith.constant dense<0xFF800000> : vector<4x32xf32>
    %20 = vector.multi_reduction <maximumf>, %19, %cst_13 [1] : vector<4x8x32xf32> to vector<4x32xf32>
    %21 = vector.extract_strided_slice %16 {offsets = [0, 16, 0], sizes = [4, 8, 32], strides = [1, 1, 1]} : vector<4x32x32xf32> to vector<4x8x32xf32>
    %cst_14 = arith.constant dense<0xFF800000> : vector<4x32xf32>
    %22 = vector.multi_reduction <maximumf>, %21, %cst_14 [1] : vector<4x8x32xf32> to vector<4x32xf32>
    %23 = vector.extract_strided_slice %16 {offsets = [0, 24, 0], sizes = [4, 8, 32], strides = [1, 1, 1]} : vector<4x32x32xf32> to vector<4x8x32xf32>
    %cst_15 = arith.constant dense<0xFF800000> : vector<4x32xf32>
    %24 = vector.multi_reduction <maximumf>, %23, %cst_15 [1] : vector<4x8x32xf32> to vector<4x32xf32>
    %25 = tpu.concatenate %18, %20, %22, %24 in 1 : vector<4x32xf32>, vector<4x32xf32>, vector<4x32xf32>, vector<4x32xf32> -> vector<4x128xf32>
    %c0_16 = arith.constant 0 : index
    %c0_17 = arith.constant 0 : index
    %26 = vector.load %arg6[%c0_16, %c0_17] : memref<4x128xf32, #tpu.memory_space<vmem>>, vector<4x128xf32>
    tpu.vector_store %arg6[%c0_16, %c0_17], %25 {strides = array<i32>} : memref<4x128xf32, #tpu.memory_space<vmem>>, vector<4x128xf32>,
    return
  }
  func.func @transform_0(%arg0: i32) -> (i32, i32) {
    %c0_i32 = arith.constant 0 : i32
    %c0_i32_0 = arith.constant 0 : i32
    return %arg0, %c0_i32 : i32, i32
  }
  func.func @transform_1(%arg0: i32) -> (i32, i32) {
    %c0_i32 = arith.constant 0 : i32
    %c0_i32_0 = arith.constant 0 : i32
    %c0_i32_1 = arith.constant 0 : i32
    return %c0_i32, %c0_i32_0 : i32, i32
  }
  func.func @transform_2(%arg0: i32) -> (i32, i32) {
    %c0_i32 = arith.constant 0 : i32
    %c0_i32_0 = arith.constant 0 : i32
    %c0_i32_1 = arith.constant 0 : i32
    return %c0_i32, %c0_i32_0 : i32, i32
  }
  func.func @transform_3(%arg0: i32) -> (i32, i32) {
    %c0_i32 = arith.constant 0 : i32
    %c0_i32_0 = arith.constant 0 : i32
    %c0_i32_1 = arith.constant 0 : i32
    return %c0_i32, %c0_i32_0 : i32, i32
  }
  func.func @transform_4(%arg0: i32) -> (i32, i32) {
    %c0_i32 = arith.constant 0 : i32
    %c0_i32_0 = arith.constant 0 : i32
    %c0_i32_1 = arith.constant 0 : i32
    return %c0_i32, %c0_i32_0 : i32, i32
  }
  func.func @transform_5(%arg0: i32) -> (i32, i32) {
    %c0_i32 = arith.constant 0 : i32
    %c0_i32_0 = arith.constant 0 : i32
    return %arg0, %c0_i32 : i32, i32
  }
}

</mosaic_0001>

<llo_original>
// kernel: tpu_custom_call.1
$region0: #{tpu_custom_call.1}
  #allocation0 [shape = 'u32[]', space=smem, size = 0x4, offset = 0x4, fixed_abs, tag = 'smem constant byte address 0x4 - core index']
  #allocation1 [shape = 'u32[144,128]{1,0:T(1,128)}', space=vmem, size = 0x12000, scoped, tag = 'internal scratch']
  %s0 = inlined_call_operand.vmem [shape: bf16[128,7], index: 0, kind: input, shape index: {}]
  %s1 = inlined_call_operand.vmem [shape: bf16[7,16], index: 1, kind: input, shape index: {}]
  %s2 = inlined_call_operand.vmem [shape: f32[1,16], index: 2, kind: input, shape index: {}]
  %s3 = inlined_call_operand.vmem [shape: bf16[16,32], index: 3, kind: input, shape index: {}]
  %s4 = inlined_call_operand.vmem [shape: f32[1,32], index: 4, kind: input, shape index: {}]
  %s5 = inlined_call_operand.hbm [shape: f32[4,128], index: 5, kind: output, shape index: {}]
  %s6 = sld [smem:[#allocation0]]
  $region30: #{tpu_custom_call.1} parent=0
    _
  %s8 = ssub.s32 1, %s6
  %s9 = scalar_select 0, %s8, %s6
  $region1: #{tpu_custom_call.1} parent=0
    #allocation2 [shape = 'u8[2048]{0}', space=vmem, size = 0x800, scoped, tag = 'output window, operand 0, single buffered']
    #allocation3 [shape = 's32[1]{0}', space=sflag, size = 0x4, scoped, tag = 'scoped memory for tpu_custom_call.1']
    %10 = vsyncpa [#allocation3], 0
    // Predicated region
    $region2: #{tpu_custom_call.1} parent=1 // pred_check
      _
    $region3: #{tpu_custom_call.1} parent=1 // pred_check_branch
      %12 = sbr.rel (0) target = $region5
    $region4: #{tpu_custom_call.1} parent=1 // pred_region
      _
    $region5: #{tpu_custom_call.1} parent=1 // pred_fallthru
      _
    // Predicated region
    $region6: #{tpu_custom_call.1} parent=1 // pred_check
      _
    $region7: #{tpu_custom_call.1} parent=1 // pred_check_branch
      %14 = sbr.rel (0) target = $region9
    $region8: #{tpu_custom_call.1} parent=1 // pred_region
      _
    $region9: #{tpu_custom_call.1} parent=1 // pred_fallthru
      _
    // Predicated region
    $region10: #{tpu_custom_call.1} parent=1 // pred_check
      _
    $region11: #{tpu_custom_call.1} parent=1 // pred_check_branch
      %16 = sbr.rel (0) target = $region13
    $region12: #{tpu_custom_call.1} parent=1 // pred_region
      _
    $region13: #{tpu_custom_call.1} parent=1 // pred_fallthru
      _
    // Predicated region
    $region14: #{tpu_custom_call.1} parent=1 // pred_check
      _
    $region15: #{tpu_custom_call.1} parent=1 // pred_check_branch
      %18 = sbr.rel (0) target = $region17
    $region16: #{tpu_custom_call.1} parent=1 // pred_region
      _
    $region17: #{tpu_custom_call.1} parent=1 // pred_fallthru
      _
    // Predicated region
    $region18: #{tpu_custom_call.1} parent=1 // pred_check
      _
    $region19: #{tpu_custom_call.1} parent=1 // pred_check_branch
      %20 = sbr.rel (0) target = $region21
    $region20: #{tpu_custom_call.1} parent=1 // pred_region
      _
    $region21: #{tpu_custom_call.1} parent=1 // pred_fallthru
      _
    %v22 = vld [vmem:[%s0] sm:$0xf]
    %v23 = vld [vmem:[%s0 + $0x4] sm:$0xf]
    %v24 = vld [vmem:[%s0 + $0x8] sm:$0xf]
    %v25 = vld [vmem:[%s0 + $0xc] sm:$0xf]
    %v26 = vld [vmem:[%s0 + $0x10] sm:$0xf]
    %v27 = vld [vmem:[%s0 + $0x14] sm:$0xf]
    %v28 = vld [vmem:[%s0 + $0x18] sm:$0xf]
    %v29 = vld [vmem:[%s0 + $0x1c] sm:$0xf]
    %v30 = vld [vmem:[%s0 + $0x20] sm:$0xf]
    %v31 = vld [vmem:[%s0 + $0x24] sm:$0xf]
    %v32 = vld [vmem:[%s0 + $0x28] sm:$0xf]
    %v33 = vld [vmem:[%s0 + $0x2c] sm:$0xf]
    %v34 = vld [vmem:[%s0 + $0x30] sm:$0xf]
    %v35 = vld [vmem:[%s0 + $0x34] sm:$0xf]
    %v36 = vld [vmem:[%s0 + $0x38] sm:$0xf]
    %v37 = vld [vmem:[%s0 + $0x3c] sm:$0xf]
    %v38 = vld [vmem:[%s1] sm:$0xf]
    %v39 = vld [vmem:[%s2] sm:$0x1]
    %v41 = vlaneseq
    %v42 = vshrl.u32 %v41, 7
    %v43 = vsub.s32 0, %v42
    %v44 = vrot.slane %v39, %v43
    %v62 = vunpack.c.l.b16 %v22
    %v63 = vunpack.c.l.b16 %v23
    %v64 = vunpack.c.l.b16 %v24
    %v65 = vunpack.c.l.b16 %v25
    %v66 = vunpack.c.l.b16 %v26
    %v67 = vunpack.c.l.b16 %v27
    %v68 = vunpack.c.l.b16 %v28
    %v69 = vunpack.c.l.b16 %v29
    %v70 = vunpack.c.l.b16 %v30
    %v71 = vunpack.c.l.b16 %v31
    %v72 = vunpack.c.l.b16 %v32
    %v73 = vunpack.c.l.b16 %v33
    %v74 = vunpack.c.l.b16 %v34
    %v75 = vunpack.c.l.b16 %v35
    %v76 = vunpack.c.l.b16 %v36
    %v77 = vunpack.c.l.b16 %v37
    %v78 = vpack.c.b16 %v63, %v62
    %v79 = vpack.c.b16 %v65, %v64
    %v80 = vpack.c.b16 %v67, %v66
    %v81 = vpack.c.b16 %v69, %v68
    %v82 = vpack.c.b16 %v71, %v70
    %v83 = vpack.c.b16 %v73, %v72
    %v84 = vpack.c.b16 %v75, %v74
    %v85 = vpack.c.b16 %v77, %v76
    %vm86 = vcmask 56320
    %v88 = vsel %vm86, %v78, 0
    %v91 = vsel %vm86, %v79, 0
    %v94 = vsel %vm86, %v80, 0
    %v97 = vsel %vm86, %v81, 0
    %v100 = vsel %vm86, %v82, 0
    %v103 = vsel %vm86, %v83, 0
    %v106 = vsel %vm86, %v84, 0
    %v109 = vsel %vm86, %v85, 0
    %vm111 = vcmask 1042432
    %vm112 = vcmask 1043456
    %v113 = vsel %vm111, 4294967295, 65535
    %v114 = vsel %vm112, %v113, 0
    %v116 = vand.u32 %v38, %v114
    %118 = vmatprep.subr.bf16.mxu0 0
    %119 = vmatpush1.bf16.msra.mxu0 0
    %120 = vmatprep.subr.bf16.mxu0 0
    %121 = vmatpush1.bf16.msra.mxu0 0
    %122 = vmatprep.subr.bf16.mxu0 0
    %123 = vmatpush1.bf16.msra.mxu0 0
    %124 = vmatprep.subr.bf16.mxu0 0
    %125 = vmatpush1.bf16.msra.mxu0 0
    %126 = vmatprep.subr.bf16.mxu0 0
    %127 = vmatpush1.bf16.msra.mxu0 0
    %128 = vmatprep.subr.bf16.mxu0 0
    %129 = vmatpush1.bf16.msra.mxu0 0
    %130 = vmatprep.subr.bf16.mxu0 0
    %131 = vmatpush1.bf16.msra.mxu0 0
    %132 = vmatprep.subr.bf16.mxu0 0
    %133 = vmatpush1.bf16.msra.mxu0 %v116
    %134 = vmatprep.subr.bf16.mxu0 0
    %135 = vmatpush2.bf16.msra.mxu0 0
    %136 = vmatprep.subr.bf16.mxu0 0
    %137 = vmatpush2.bf16.msra.mxu0 0
    %138 = vmatprep.subr.bf16.mxu0 0
    %139 = vmatpush2.bf16.msra.mxu0 0
    %140 = vmatprep.subr.bf16.mxu0 0
    %141 = vmatpush2.bf16.msra.mxu0 0
    %142 = vmatprep.subr.bf16.mxu0 0
    %143 = vmatpush2.bf16.msra.mxu0 0
    %144 = vmatprep.subr.bf16.mxu0 0
    %145 = vmatpush2.bf16.msra.mxu0 0
    %146 = vmatprep.subr.bf16.mxu0 0
    %147 = vmatpush2.bf16.msra.mxu0 0
    %148 = vmatprep.subr.bf16.mxu0 0
    %149 = vmatpush2.bf16.msra.mxu0 0
    %150 = vmatprep.mubr.bf16.mxu0 0
    %151 = vmatmul.mubr.bf16.gmra.mxu0 %v88
    %v152 = vpop.f32.mrf.mxu0
    %v153 = vadd.f32 %v44, %v152
    %v154 = vpop.f32.mrf.mxu0
    %v155 = vpop.f32.mrf.mxu0
    %v156 = vadd.f32 %v44, %v155
    %v157 = vpop.f32.mrf.mxu0
    %158 = vmatprep.mubr.bf16.mxu0 0
    %159 = vmatmul.mubr.bf16.gmra.mxu0 %v91
    %v160 = vpop.f32.mrf.mxu0
    %v161 = vadd.f32 %v44, %v160
    %v162 = vpop.f32.mrf.mxu0
    %v163 = vpop.f32.mrf.mxu0
    %v164 = vadd.f32 %v44, %v163
    %v165 = vpop.f32.mrf.mxu0
    %166 = vmatprep.mubr.bf16.mxu0 0
    %167 = vmatmul.mubr.bf16.gmra.mxu0 %v94
    %v168 = vpop.f32.mrf.mxu0
    %v169 = vadd.f32 %v44, %v168
    %v170 = vpop.f32.mrf.mxu0
    %v171 = vpop.f32.mrf.mxu0
    %v172 = vadd.f32 %v44, %v171
    %v173 = vpop.f32.mrf.mxu0
    %174 = vmatprep.mubr.bf16.mxu0 0
    %175 = vmatmul.mubr.bf16.gmra.mxu0 %v97
    %v176 = vpop.f32.mrf.mxu0
    %v177 = vadd.f32 %v44, %v176
    %v178 = vpop.f32.mrf.mxu0
    %v179 = vpop.f32.mrf.mxu0
    %v180 = vadd.f32 %v44, %v179
    %v181 = vpop.f32.mrf.mxu0
    %182 = vmatprep.mubr.bf16.mxu0 0
    %183 = vmatmul.mubr.bf16.gmra.mxu0 %v100
    %v184 = vpop.f32.mrf.mxu0
    %v185 = vadd.f32 %v44, %v184
    %v186 = vpop.f32.mrf.mxu0
    %v187 = vpop.f32.mrf.mxu0
    %v188 = vadd.f32 %v44, %v187
    %v189 = vpop.f32.mrf.mxu0
    %190 = vmatprep.mubr.bf16.mxu0 0
    %191 = vmatmul.mubr.bf16.gmra.mxu0 %v103
    %v192 = vpop.f32.mrf.mxu0
    %v193 = vadd.f32 %v44, %v192
    %v194 = vpop.f32.mrf.mxu0
    %v195 = vpop.f32.mrf.mxu0
    %v196 = vadd.f32 %v44, %v195
    %v197 = vpop.f32.mrf.mxu0
    %198 = vmatprep.mubr.bf16.mxu0 0
    %199 = vmatmul.mubr.bf16.gmra.mxu0 %v106
    %v200 = vpop.f32.mrf.mxu0
    %v201 = vadd.f32 %v44, %v200
    %v202 = vpop.f32.mrf.mxu0
    %v203 = vpop.f32.mrf.mxu0
    %v204 = vadd.f32 %v44, %v203
    %v205 = vpop.f32.mrf.mxu0
    %206 = vmatprep.mubr.bf16.mxu0 0
    %207 = vmatmul.mubr.bf16.gmra.mxu0 %v109
    %v208 = vpop.f32.mrf.mxu0
    %v209 = vadd.f32 %v44, %v208
    %v210 = vpop.f32.mrf.mxu0
    %v211 = vpop.f32.mrf.mxu0
    %v212 = vadd.f32 %v44, %v211
    %v213 = vpop.f32.mrf.mxu0
    %214 = vdwg.mxu0
    %v215 = vmax.f32 %v153, 0.0
    %v216 = vmax.f32 %v156, 0.0
    %v217 = vmax.f32 %v161, 0.0
    %v218 = vmax.f32 %v164, 0.0
    %v219 = vmax.f32 %v169, 0.0
    %v220 = vmax.f32 %v172, 0.0
    %v221 = vmax.f32 %v177, 0.0
    %v222 = vmax.f32 %v180, 0.0
    %v223 = vmax.f32 %v185, 0.0
    %v224 = vmax.f32 %v188, 0.0
    %v225 = vmax.f32 %v193, 0.0
    %v226 = vmax.f32 %v196, 0.0
    %v227 = vmax.f32 %v201, 0.0
    %v228 = vmax.f32 %v204, 0.0
    %v229 = vmax.f32 %v209, 0.0
    %v230 = vmax.f32 %v212, 0.0
    %v231 = vpack.c.bf16 %v216, %v215
    %v232 = vpack.c.bf16 %v218, %v217
    %v233 = vpack.c.bf16 %v220, %v219
    %v234 = vpack.c.bf16 %v222, %v221
    %v235 = vpack.c.bf16 %v224, %v223
    %v236 = vpack.c.bf16 %v226, %v225
    %v237 = vpack.c.bf16 %v228, %v227
    %v238 = vpack.c.bf16 %v230, %v229
    %v239 = vld [vmem:[%s3] sm:$0xf]
    %v240 = vld [vmem:[%s3 + $0x4] sm:$0xf]
    %v241 = vld [vmem:[%s4] sm:$0x1]
    %v243 = vlaneseq
    %v244 = vshrl.u32 %v243, 7
    %v245 = vsub.s32 0, %v244
    %v246 = vrot.slane %v241, %v245
    %v250 = vunpack.c.l.b16 %v239
    %v251 = vunpack.c.l.b16 %v240
    %v252 = vpack.c.b16 %v251, %v250
    %vm254 = vcmask 130048
    %v256 = vsel %vm254, %v231, 0
    %v259 = vsel %vm254, %v232, 0
    %v262 = vsel %vm254, %v233, 0
    %v265 = vsel %vm254, %v234, 0
    %v268 = vsel %vm254, %v235, 0
    %v271 = vsel %vm254, %v236, 0
    %v274 = vsel %vm254, %v237, 0
    %v277 = vsel %vm254, %v238, 0
    %279 = vmatprep.subr.bf16.mxu0 0
    %280 = vmatpush1.bf16.msra.mxu0 0
    %281 = vmatprep.subr.bf16.mxu0 0
    %282 = vmatpush1.bf16.msra.mxu0 0
    %283 = vmatprep.subr.bf16.mxu0 0
    %284 = vmatpush1.bf16.msra.mxu0 0
    %285 = vmatprep.subr.bf16.mxu0 0
    %286 = vmatpush1.bf16.msra.mxu0 0
    %287 = vmatprep.subr.bf16.mxu0 0
    %288 = vmatpush1.bf16.msra.mxu0 0
    %289 = vmatprep.subr.bf16.mxu0 0
    %290 = vmatpush1.bf16.msra.mxu0 0
    %291 = vmatprep.subr.bf16.mxu0 0
    %292 = vmatpush1.bf16.msra.mxu0 0
    %293 = vmatprep.subr.bf16.mxu0 0
    %294 = vmatpush1.bf16.msra.mxu0 %v252
    %295 = vmatprep.subr.bf16.mxu0 0
    %296 = vmatpush2.bf16.msra.mxu0 0
    %297 = vmatprep.subr.bf16.mxu0 0
    %298 = vmatpush2.bf16.msra.mxu0 0
    %299 = vmatprep.subr.bf16.mxu0 0
    %300 = vmatpush2.bf16.msra.mxu0 0
    %301 = vmatprep.subr.bf16.mxu0 0
    %302 = vmatpush2.bf16.msra.mxu0 0
    %303 = vmatprep.subr.bf16.mxu0 0
    %304 = vmatpush2.bf16.msra.mxu0 0
    %305 = vmatprep.subr.bf16.mxu0 0
    %306 = vmatpush2.bf16.msra.mxu0 0
    %307 = vmatprep.subr.bf16.mxu0 0
    %308 = vmatpush2.bf16.msra.mxu0 0
    %309 = vmatprep.subr.bf16.mxu0 0
    %310 = vmatpush2.bf16.msra.mxu0 0
    %311 = vmatprep.mubr.bf16.mxu0 0
    %312 = vmatmul.mubr.bf16.gmra.mxu0 %v256
    %v313 = vpop.f32.mrf.mxu0
    %v314 = vadd.f32 %v246, %v313
    %v315 = vpop.f32.mrf.mxu0
    %v316 = vpop.f32.mrf.mxu0
    %v317 = vadd.f32 %v246, %v316
    %v318 = vpop.f32.mrf.mxu0
    %319 = vmatprep.mubr.bf16.mxu0 0
    %320 = vmatmul.mubr.bf16.gmra.mxu0 %v259
    %v321 = vpop.f32.mrf.mxu0
    %v322 = vadd.f32 %v246, %v321
    %v323 = vpop.f32.mrf.mxu0
    %v324 = vpop.f32.mrf.mxu0
    %v325 = vadd.f32 %v246, %v324
    %v326 = vpop.f32.mrf.mxu0
    %327 = vmatprep.mubr.bf16.mxu0 0
    %328 = vmatmul.mubr.bf16.gmra.mxu0 %v262
    %v329 = vpop.f32.mrf.mxu0
    %v330 = vadd.f32 %v246, %v329
    %v331 = vpop.f32.mrf.mxu0
    %v332 = vpop.f32.mrf.mxu0
    %v333 = vadd.f32 %v246, %v332
    %v334 = vpop.f32.mrf.mxu0
    %335 = vmatprep.mubr.bf16.mxu0 0
    %336 = vmatmul.mubr.bf16.gmra.mxu0 %v265
    %v337 = vpop.f32.mrf.mxu0
    %v338 = vadd.f32 %v246, %v337
    %v339 = vpop.f32.mrf.mxu0
    %v340 = vpop.f32.mrf.mxu0
    %v341 = vadd.f32 %v246, %v340
    %v342 = vpop.f32.mrf.mxu0
    %343 = vmatprep.mubr.bf16.mxu0 0
    %344 = vmatmul.mubr.bf16.gmra.mxu0 %v268
    %v345 = vpop.f32.mrf.mxu0
    %v346 = vadd.f32 %v246, %v345
    %v347 = vpop.f32.mrf.mxu0
    %v348 = vpop.f32.mrf.mxu0
    %v349 = vadd.f32 %v246, %v348
    %v350 = vpop.f32.mrf.mxu0
    %351 = vmatprep.mubr.bf16.mxu0 0
    %352 = vmatmul.mubr.bf16.gmra.mxu0 %v271
    %v353 = vpop.f32.mrf.mxu0
    %v354 = vadd.f32 %v246, %v353
    %v355 = vpop.f32.mrf.mxu0
    %v356 = vpop.f32.mrf.mxu0
    %v357 = vadd.f32 %v246, %v356
    %v358 = vpop.f32.mrf.mxu0
    %359 = vmatprep.mubr.bf16.mxu0 0
    %360 = vmatmul.mubr.bf16.gmra.mxu0 %v274
    %v361 = vpop.f32.mrf.mxu0
    %v362 = vadd.f32 %v246, %v361
    %v363 = vpop.f32.mrf.mxu0
    %v364 = vpop.f32.mrf.mxu0
    %v365 = vadd.f32 %v246, %v364
    %v366 = vpop.f32.mrf.mxu0
    %367 = vmatprep.mubr.bf16.mxu0 0
    %368 = vmatmul.mubr.bf16.gmra.mxu0 %v277
    %v369 = vpop.f32.mrf.mxu0
    %v370 = vadd.f32 %v246, %v369
    %v371 = vpop.f32.mrf.mxu0
    %v372 = vpop.f32.mrf.mxu0
    %v373 = vadd.f32 %v246, %v372
    %v374 = vpop.f32.mrf.mxu0
    %375 = vdwg.mxu0
    %v376 = vmax.f32 %v314, 0.0
    %v377 = vmax.f32 %v317, 0.0
    %v378 = vmax.f32 %v322, 0.0
    %v379 = vmax.f32 %v325, 0.0
    %v380 = vmax.f32 %v330, 0.0
    %v381 = vmax.f32 %v333, 0.0
    %v382 = vmax.f32 %v338, 0.0
    %v383 = vmax.f32 %v341, 0.0
    %v384 = vmax.f32 %v346, 0.0
    %v385 = vmax.f32 %v349, 0.0
    %v386 = vmax.f32 %v354, 0.0
    %v387 = vmax.f32 %v357, 0.0
    %v388 = vmax.f32 %v362, 0.0
    %v389 = vmax.f32 %v365, 0.0
    %v390 = vmax.f32 %v370, 0.0
    %v391 = vmax.f32 %v373, 0.0
    %vm392 = vcmask 261120
    %v393 = vsel %vm392, %v376, -inf
    %v394 = vrot.slane %v393, 4
    %v395 = vmax.f32 %v393, %v394
    %v396 = vrot.slane %v395, 2
    %v397 = vmax.f32 %v395, %v396
    %v398 = vrot.slane %v397, 1
    %v399 = vmax.f32 %v397, %v398
    %v400 = vsel %vm392, %v380, -inf
    %v401 = vrot.slane %v400, 4
    %v402 = vmax.f32 %v400, %v401
    %v403 = vrot.slane %v402, 2
    %v404 = vmax.f32 %v402, %v403
    %v405 = vrot.slane %v404, 1
    %v406 = vmax.f32 %v404, %v405
    %v407 = vsel %vm392, %v384, -inf
    %v408 = vrot.slane %v407, 4
    %v409 = vmax.f32 %v407, %v408
    %v410 = vrot.slane %v409, 2
    %v411 = vmax.f32 %v409, %v410
    %v412 = vrot.slane %v411, 1
    %v413 = vmax.f32 %v411, %v412
    %v414 = vsel %vm392, %v388, -inf
    %v415 = vrot.slane %v414, 4
    %v416 = vmax.f32 %v414, %v415
    %v417 = vrot.slane %v416, 2
    %v418 = vmax.f32 %v416, %v417
    %v419 = vrot.slane %v418, 1
    %v420 = vmax.f32 %v418, %v419
    %v421 = vsel %vm392, %v377, -inf
    %v422 = vrot.slane %v421, 4
    %v423 = vmax.f32 %v421, %v422
    %v424 = vrot.slane %v423, 2
    %v425 = vmax.f32 %v423, %v424
    %v426 = vrot.slane %v425, 1
    %v427 = vmax.f32 %v425, %v426
    %v428 = vsel %vm392, %v381, -inf
    %v429 = vrot.slane %v428, 4
    %v430 = vmax.f32 %v428, %v429
    %v431 = vrot.slane %v430, 2
    %v432 = vmax.f32 %v430, %v431
    %v433 = vrot.slane %v432, 1
    %v434 = vmax.f32 %v432, %v433
    %v435 = vsel %vm392, %v385, -inf
    %v436 = vrot.slane %v435, 4
    %v437 = vmax.f32 %v435, %v436
    %v438 = vrot.slane %v437, 2
    %v439 = vmax.f32 %v437, %v438
    %v440 = vrot.slane %v439, 1
    %v441 = vmax.f32 %v439, %v440
    %v442 = vsel %vm392, %v389, -inf
    %v443 = vrot.slane %v442, 4
    %v444 = vmax.f32 %v442, %v443
    %v445 = vrot.slane %v444, 2
    %v446 = vmax.f32 %v444, %v445
    %v447 = vrot.slane %v446, 1
    %v448 = vmax.f32 %v446, %v447
    %v449 = vsel %vm392, %v378, -inf
    %v450 = vrot.slane %v449, 4
    %v451 = vmax.f32 %v449, %v450
    %v452 = vrot.slane %v451, 2
    %v453 = vmax.f32 %v451, %v452
    %v454 = vrot.slane %v453, 1
    %v455 = vmax.f32 %v453, %v454
    %v456 = vsel %vm392, %v382, -inf
    %v457 = vrot.slane %v456, 4
    %v458 = vmax.f32 %v456, %v457
    %v459 = vrot.slane %v458, 2
    %v460 = vmax.f32 %v458, %v459
    %v461 = vrot.slane %v460, 1
    %v462 = vmax.f32 %v460, %v461
    %v463 = vsel %vm392, %v386, -inf
    %v464 = vrot.slane %v463, 4
    %v465 = vmax.f32 %v463, %v464
    %v466 = vrot.slane %v465, 2
    %v467 = vmax.f32 %v465, %v466
    %v468 = vrot.slane %v467, 1
    %v469 = vmax.f32 %v467, %v468
    %v470 = vsel %vm392, %v390, -inf
    %v471 = vrot.slane %v470, 4
    %v472 = vmax.f32 %v470, %v471
    %v473 = vrot.slane %v472, 2
    %v474 = vmax.f32 %v472, %v473
    %v475 = vrot.slane %v474, 1
    %v476 = vmax.f32 %v474, %v475
    %v477 = vsel %vm392, %v379, -inf
    %v478 = vrot.slane %v477, 4
    %v479 = vmax.f32 %v477, %v478
    %v480 = vrot.slane %v479, 2
    %v481 = vmax.f32 %v479, %v480
    %v482 = vrot.slane %v481, 1
    %v483 = vmax.f32 %v481, %v482
    %v484 = vsel %vm392, %v383, -inf
    %v485 = vrot.slane %v484, 4
    %v486 = vmax.f32 %v484, %v485
    %v487 = vrot.slane %v486, 2
    %v488 = vmax.f32 %v486, %v487
    %v489 = vrot.slane %v488, 1
    %v490 = vmax.f32 %v488, %v489
    %v491 = vsel %vm392, %v387, -inf
    %v492 = vrot.slane %v491, 4
    %v493 = vmax.f32 %v491, %v492
    %v494 = vrot.slane %v493, 2
    %v495 = vmax.f32 %v493, %v494
    %v496 = vrot.slane %v495, 1
    %v497 = vmax.f32 %v495, %v496
    %v498 = vsel %vm392, %v391, -inf
    %v499 = vrot.slane %v498, 4
    %v500 = vmax.f32 %v498, %v499
    %v501 = vrot.slane %v500, 2
    %v502 = vmax.f32 %v500, %v501
    %v503 = vrot.slane %v502, 1
    %v504 = vmax.f32 %v502, %v503
    %vm509 = vcmask 1041409
    %v510 = vsel %vm509, %v406, %v399
    %vm511 = vcmask 1042434
    %v512 = vsel %vm511, %v413, %v510
    %vm513 = vcmask 1043459
    %v514 = vsel %vm513, %v420, %v512
    %v520 = vsel %vm509, %v434, %v427
    %v521 = vsel %vm511, %v441, %v520
    %v522 = vsel %vm513, %v448, %v521
    %523 = vrot.lane.b32.xlu0 %v522, 32
    %v524 = vpop.permute.xlu0 %523
    %v530 = vsel %vm509, %v462, %v455
    %v531 = vsel %vm511, %v469, %v530
    %v532 = vsel %vm513, %v476, %v531
    %533 = vrot.lane.b32.xlu0 %v532, 64
    %v534 = vpop.permute.xlu0 %533
    %v540 = vsel %vm509, %v490, %v483
    %v541 = vsel %vm511, %v497, %v540
    %v542 = vsel %vm513, %v504, %v541
    %543 = vrot.lane.b32.xlu0 %v542, 96
    %v544 = vpop.permute.xlu0 %543
    %v546 = vsel %vm392, %v514, %v524
    %vm547 = vcmask 523264
    %v548 = vsel %vm547, %v546, %v534
    %vm549 = vcmask 785408
    %v550 = vsel %vm549, %v548, %v544
    %551 = vst [vmem:[#allocation2] sm:$0xf] %v550
    // Predicated region
    $region22: #{tpu_custom_call.1} parent=1 // pred_check
      _
    $region23: #{tpu_custom_call.1} parent=1 // pred_check_branch
      %553 = sbr.rel (0) target = $region25
    $region24: #{tpu_custom_call.1} parent=1 // pred_region
      %s555 = ssub.s32 64, 64
      %556 = vsyncadd [#allocation3], %s555
      %s558 = sshll.u32 [#allocation2], 4
      %s559 = int_to_ptr.vmem [resolvable:$true] %s558
      %561 = dma.vmem_to_hbm [thread:$0]  %s559, 64, %s5, [#allocation3]
    $region25: #{tpu_custom_call.1} parent=1 // pred_fallthru
      _
    // Predicated region
    $region26: #{tpu_custom_call.1} parent=1 // pred_check
      _
    $region27: #{tpu_custom_call.1} parent=1 // pred_check_branch
      %563 = sbr.rel (0) target = $region29
    $region28: #{tpu_custom_call.1} parent=1 // pred_region
      %564 = dma.done [#allocation3], 64
    $region29: #{tpu_custom_call.1} parent=1 // pred_fallthru
      _
    %565 = vsyncpa [#allocation3], 1

</llo_original>
